<compile_context>
chip_gen: v7x
topology: tpu7x:2x2x1
jax: 0.10.0
libtpu: 0.0.40
codegen_flags: <defaults>
</compile_context>

<pallas_src>
import functools

import jax
import jax.numpy as jnp
from jax.experimental import pallas as pl
from jax.experimental.pallas import tpu as pltpu

_LANES = 128


def _tv_kernel(x_ref, h_ref, w_ref, *, width):
    """One grid step: T flattened (H*W) slabs -> per-block partial TV sums.

    x_ref: (T, H*W) block (input dtype; cast to f32 in-register only).
    h_ref, w_ref: (1, 128) lane-dense per-block partial-sum outputs.
    """
    x = x_ref[...].astype(jnp.float32)                       # (T, HW)
    t, hw = x.shape

    idx = jax.lax.broadcasted_iota(jnp.int32, (t, hw), dimension=1)

    # Vertical neighbour:   dh[i] = x[i] - x[i - width], valid for i >= width.
    xh = pltpu.roll(x, width, 1)
    dh = jnp.where(idx >= width, x - xh, 0.0)

    # Horizontal neighbour: dw[i] = x[i] - x[i - 1], invalid at row starts.
    xw = pltpu.roll(x, 1, 1)
    dw = jnp.where(idx % width != 0, x - xw, 0.0)

    h_sum = jnp.sum(dh * dh)
    w_sum = jnp.sum(dw * dw)

    # Full-width (unmasked) lane-dense stores of the per-block partials.
    h_ref[...] = jnp.zeros_like(h_ref) + h_sum
    w_ref[...] = jnp.zeros_like(w_ref) + w_sum


def _pick_block_rows(bc, t_max):
    """Largest legal T that fits the budget.

    Legal second-minor block sizes: T == bc (full dim), T a multiple of 8
    dividing bc, or T == 1 (fallback).
    """
    if bc <= t_max:
        return bc
    best = 1
    t = 8
    while t <= t_max:
        if bc % t == 0:
            best = t
        t += 8
    return best


def tv_loss(x, tv_loss_weight=1.0, *, block_bytes=2 * 1024 * 1024):
    """Pallas implementation of TVLoss.forward for NCHW input `x`."""
    B, C, H, W = x.shape
    bc, hw = B * C, H * W

    # Flatten each (H, W) slab onto the lane axis (contiguity-preserving, free).
    x2 = x.reshape(bc, hw)

    hw_pad = pl.cdiv(hw, _LANES) * _LANES               # lane padding in VMEM
    t_max = max(1, block_bytes // (hw_pad * x.dtype.itemsize))
    T = _pick_block_rows(bc, t_max)
    n_blocks = bc // T
    # TODO(synk): if a single flattened slab (H*W) ever exceeds the VMEM budget,
    # additionally tile the flattened axis with a W-element halo.

    grid_spec = pltpu.PrefetchScalarGridSpec(
        num_scalar_prefetch=0,
        grid=(n_blocks,),
        in_specs=[pl.BlockSpec((T, hw), lambda i: (i, 0))],
        out_specs=[
            pl.BlockSpec((1, _LANES), lambda i: (i, 0)),
            pl.BlockSpec((1, _LANES), lambda i: (i, 0)),
        ],
    )

    h_part, w_part = pl.pallas_call(
        functools.partial(_tv_kernel, width=W),
        grid_spec=grid_spec,
        out_shape=(
            jax.ShapeDtypeStruct((n_blocks, _LANES), jnp.float32),
            jax.ShapeDtypeStruct((n_blocks, _LANES), jnp.float32),
        ),
        compiler_params=pltpu.CompilerParams(
            dimension_semantics=("parallel",),
            vmem_limit_bytes=32 * 1024 * 1024,
        ),
    )(x2)

    # Per-block partials -> tree-sum in the wrapper: race-free with the
    # "parallel" grid axis and more robust f32 accumulation.
    h_tv = jnp.sum(h_part[:, 0])
    w_tv = jnp.sum(w_part[:, 0])

    count_h = C * (H - 1) * W
    count_w = C * H * (W - 1)
    return tv_loss_weight * 2.0 * (h_tv / count_h + w_tv / count_w) / B


def _tv_loss_ref(x, tv_loss_weight=1.0):
    """Pure-JAX reference mirroring the PyTorch module (f32 math)."""
    B, C, H, W = x.shape
    xf = x.astype(jnp.float32)
    count_h = C * (H - 1) * W
    count_w = C * H * (W - 1)
    h_tv = jnp.sum((xf[:, :, 1:, :] - xf[:, :, :-1, :]) ** 2)
    w_tv = jnp.sum((xf[:, :, :, 1:] - xf[:, :, :, :-1]) ** 2)
    return tv_loss_weight * 2.0 * (h_tv / count_h + w_tv / count_w) / B


if __name__ == "__main__":
    key = jax.random.PRNGKey(0)
    x = jax.random.normal(key, (2, 4, 16, 16), dtype=jnp.float32)

    # 1) Default path: whole tensor in a single (8, 256) block, grid = (1,).
    out = jax.block_until_ready(tv_loss(x, tv_loss_weight=1.0))
    ref = jax.block_until_ready(_tv_loss_ref(x, tv_loss_weight=1.0))
    assert jnp.allclose(out, ref, rtol=1e-5, atol=1e-5), (out, ref)

    # 2) Multi-block path: tiny budget forces T=1 -> 8 parallel grid steps,
    #    per-block partial outputs summed in the wrapper.
    out_mb = jax.block_until_ready(tv_loss(x, tv_loss_weight=1.0, block_bytes=1024))
    assert jnp.allclose(out_mb, ref, rtol=1e-5, atol=1e-5), (out_mb, ref)

    # 3) bf16 input stays bf16 through the DMA; cast to f32 in-register only.
    xb = x.astype(jnp.bfloat16)
    out_bf = jax.block_until_ready(tv_loss(xb, tv_loss_weight=0.5))
    ref_bf = jax.block_until_ready(_tv_loss_ref(xb, tv_loss_weight=0.5))
    assert jnp.allclose(out_bf, ref_bf, rtol=5e-3, atol=5e-3), (out_bf, ref_bf)

    print("KERNEL_OK")
</pallas_src>

<mosaic_0001>
module attributes {stable_mosaic.version = 11 : i64} {
  func.func @_tv_kernel(%arg0: i32, %arg1: memref<8x256xf32, #tpu.memory_space<vmem>>, %arg2: memref<1x128xf32, #tpu.memory_space<vmem>>, %arg3: memref<1x128xf32, #tpu.memory_space<vmem>>) attributes {dimension_semantics = [#tpu.dimension_semantics<parallel>], iteration_bounds = array<i64: 1>, scalar_prefetch = 0 : i64, scratch_operands = 0 : i64, tpu.core_type = #tpu.core_type<tc>, window_params = [{transform_indices = @transform_0, window_bounds = array<i64: 8, 256>}, {transform_indices = @transform_1, window_bounds = array<i64: 1, 128>}, {transform_indices = @transform_2, window_bounds = array<i64: 1, 128>}]} {
    %c0 = arith.constant 0 : index
    %c0_0 = arith.constant 0 : index
    %0 = vector.load %arg1[%c0, %c0_0] : memref<8x256xf32, #tpu.memory_space<vmem>>, vector<8x256xf32>
    %1 = tpu.iota {dimensions = array<i32: 1>} : vector<8x256xi32>
    %c16_i32 = arith.constant 16 : i32
    %2 = tpu.dynamic_rotate %0 by %c16_i32 dim 1 : vector<8x256xf32>, i32 -> vector<8x256xf32>
    %c16_i32_1 = arith.constant 16 : i32
    %3 = vector.broadcast %c16_i32_1 : i32 to vector<8x256xi32>
    %4 = arith.cmpi sge, %1, %3 : vector<8x256xi32>
    %5 = arith.subf %0, %2 : vector<8x256xf32>
    %cst = arith.constant 0.000000e+00 : f32
    %6 = vector.broadcast %cst : f32 to vector<8x256xf32>
    %7 = arith.select %4, %5, %6 : vector<8x256xi1>, vector<8x256xf32>
    %c1_i32 = arith.constant 1 : i32
    %8 = tpu.dynamic_rotate %0 by %c1_i32 dim 1 : vector<8x256xf32>, i32 -> vector<8x256xf32>
    %c16_i32_2 = arith.constant 16 : i32
    %c0_i32 = arith.constant 0 : i32
    %9 = arith.cmpi eq, %c16_i32_2, %c0_i32 : i32
    %c1_i32_3 = arith.constant 1 : i32
    %10 = arith.select %9, %c1_i32_3, %c16_i32_2 : i32
    %11 = vector.broadcast %10 : i32 to vector<8x256xi32>
    %12 = arith.remsi %1, %11 : vector<8x256xi32>
    %c0_i32_4 = arith.constant 0 : i32
    %13 = vector.broadcast %c0_i32_4 : i32 to vector<8x256xi32>
    %14 = arith.cmpi ne, %12, %13 : vector<8x256xi32>
    %c0_i32_5 = arith.constant 0 : i32
    %15 = vector.broadcast %c0_i32_5 : i32 to vector<8x256xi32>
    %16 = arith.cmpi slt, %12, %15 : vector<8x256xi32>
    %c0_i32_6 = arith.constant 0 : i32
    %17 = arith.cmpi slt, %10, %c0_i32_6 : i32
    %18 = vector.broadcast %17 : i1 to vector<8x256xi1>
    %19 = vector.broadcast %18 : vector<8x256xi1> to vector<8x256xi1>
    %20 = arith.xori %16, %19 : vector<8x256xi1>
    %21 = arith.andi %20, %14 : vector<8x256xi1>
    %22 = vector.broadcast %10 : i32 to vector<8x256xi32>
    %23 = arith.addi %12, %22 : vector<8x256xi32>
    %24 = arith.select %21, %23, %12 : vector<8x256xi1>, vector<8x256xi32>
    %c0_i32_7 = arith.constant 0 : i32
    %25 = vector.broadcast %c0_i32_7 : i32 to vector<8x256xi32>
    %26 = arith.cmpi ne, %24, %25 : vector<8x256xi32>
    %27 = arith.subf %0, %8 : vector<8x256xf32>
    %cst_8 = arith.constant 0.000000e+00 : f32
    %28 = vector.broadcast %cst_8 : f32 to vector<8x256xf32>
    %29 = arith.select %26, %27, %28 : vector<8x256xi1>, vector<8x256xf32>
    %30 = arith.mulf %7, %7 : vector<8x256xf32>
    %31 = vector.shape_cast %30 : vector<8x256xf32> to vector<1x8x256xf32>
    %cst_9 = arith.constant dense<0.000000e+00> : vector<1xf32>
    %32 = vector.multi_reduction <add>, %31, %cst_9 [1, 2] : vector<1x8x256xf32> to vector<1xf32>
    %33 = vector.shape_cast %32 : vector<1xf32> to vector<1x1x1xf32>
    %34 = vector.extract %33[0, 0, 0] : f32 from vector<1x1x1xf32>
    %35 = arith.mulf %29, %29 : vector<8x256xf32>
    %36 = vector.shape_cast %35 : vector<8x256xf32> to vector<1x8x256xf32>
    %cst_10 = arith.constant dense<0.000000e+00> : vector<1xf32>
    %37 = vector.multi_reduction <add>, %36, %cst_10 [1, 2] : vector<1x8x256xf32> to vector<1xf32>
    %38 = vector.shape_cast %37 : vector<1xf32> to vector<1x1x1xf32>
    %39 = vector.extract %38[0, 0, 0] : f32 from vector<1x1x1xf32>
    %cst_11 = arith.constant 0.000000e+00 : f32
    %40 = vector.broadcast %cst_11 : f32 to vector<1x128xf32>
    %41 = vector.broadcast %34 : f32 to vector<1x128xf32>
    %42 = arith.addf %40, %41 : vector<1x128xf32>
    %c0_12 = arith.constant 0 : index
    %c0_13 = arith.constant 0 : index
    %43 = vector.load %arg2[%c0_12, %c0_13] : memref<1x128xf32, #tpu.memory_space<vmem>>, vector<1x128xf32>
    tpu.vector_store %arg2[%c0_12, %c0_13], %42 {strides = array<i32>} : memref<1x128xf32, #tpu.memory_space<vmem>>, vector<1x128xf32>,
    %cst_14 = arith.constant 0.000000e+00 : f32
    %44 = vector.broadcast %cst_14 : f32 to vector<1x128xf32>
    %45 = vector.broadcast %39 : f32 to vector<1x128xf32>
    %46 = arith.addf %44, %45 : vector<1x128xf32>
    %c0_15 = arith.constant 0 : index
    %c0_16 = arith.constant 0 : index
    %47 = vector.load %arg3[%c0_15, %c0_16] : memref<1x128xf32, #tpu.memory_space<vmem>>, vector<1x128xf32>
    tpu.vector_store %arg3[%c0_15, %c0_16], %46 {strides = array<i32>} : memref<1x128xf32, #tpu.memory_space<vmem>>, vector<1x128xf32>,
    return
  }
  func.func @transform_0(%arg0: i32) -> (i32, i32) {
    %c0_i32 = arith.constant 0 : i32
    %c0_i32_0 = arith.constant 0 : i32
    return %arg0, %c0_i32 : i32, i32
  }
  func.func @transform_1(%arg0: i32) -> (i32, i32) {
    %c0_i32 = arith.constant 0 : i32
    %c0_i32_0 = arith.constant 0 : i32
    return %arg0, %c0_i32 : i32, i32
  }
  func.func @transform_2(%arg0: i32) -> (i32, i32) {
    %c0_i32 = arith.constant 0 : i32
    %c0_i32_0 = arith.constant 0 : i32
    return %arg0, %c0_i32 : i32, i32
  }
}

</mosaic_0001>

<llo_original>
// kernel: tpu_custom_call.1
$region0: #{tpu_custom_call.1}
  #allocation0 [shape = 'u32[]', space=smem, size = 0x4, offset = 0x4, fixed_abs, tag = 'smem constant byte address 0x4 - core index']
  #allocation1 [shape = 'u32[144,128]{1,0:T(1,128)}', space=vmem, size = 0x12000, scoped, tag = 'internal scratch']
  %s0 = inlined_call_operand.hbm [shape: f32[8,256], index: 0, kind: input, shape index: {}]
  %s1 = inlined_call_operand.hbm [shape: f32[1,128], index: 1, kind: output, shape index: {0}]
  %s2 = inlined_call_operand.hbm [shape: f32[1,128], index: 2, kind: output, shape index: {1}]
  %3 = xla_tuple %s1, %s2
  %s4 = sld [smem:[#allocation0]]
  $region26: #{tpu_custom_call.1} parent=0
    _
  %s6 = ssub.s32 1, %s4
  %s7 = scalar_select 0, %s6, %s4
  $region1: #{tpu_custom_call.1} parent=0
    #allocation2 [shape = 'u8[8192]{0}', space=vmem, size = 0x2000, scoped, tag = 'input window, operand 0, single buffered']
    #allocation3 [shape = 's32[1]{0}', space=sflag, size = 0x4, scoped, tag = 'scoped memory for tpu_custom_call.1']
    #allocation4 [shape = 's32[1]{0}', space=sflag, size = 0x4, scoped, tag = 'scoped memory for tpu_custom_call.1']
    #allocation5 [shape = 'u8[512]{0}', space=vmem, size = 0x400, scoped, tag = 'output window, operand 0, single buffered']
    #allocation6 [shape = 'u8[512]{0}', space=vmem, size = 0x400, scoped, tag = 'output window, operand 1, single buffered']
    #allocation7 [shape = 's32[1]{0}', space=sflag, size = 0x4, scoped, tag = 'scoped memory for tpu_custom_call.1']
    %8 = vsyncpa [#allocation3], 0
    %9 = vsyncpa [#allocation4], 0
    %10 = vsyncpa [#allocation7], 0
    // Predicated region
    $region2: #{tpu_custom_call.1} parent=1 // pred_check
      _
    $region3: #{tpu_custom_call.1} parent=1 // pred_check_branch
      %12 = sbr.rel (0) target = $region5
    $region4: #{tpu_custom_call.1} parent=1 // pred_region
      %s14 = ssub.s32 256, 256
      %15 = vsyncadd [#allocation3], %s14
      %s17 = sshll.u32 [#allocation2], 4
      %s18 = int_to_ptr.vmem [resolvable:$true] %s17
      %20 = dma.hbm_to_vmem [thread:$0]  %s0, 256, %s18, [#allocation3]
    $region5: #{tpu_custom_call.1} parent=1 // pred_fallthru
      _
    // Predicated region
    $region6: #{tpu_custom_call.1} parent=1 // pred_check
      _
    $region7: #{tpu_custom_call.1} parent=1 // pred_check_branch
      %22 = sbr.rel (0) target = $region9
    $region8: #{tpu_custom_call.1} parent=1 // pred_region
      %23 = dma.done [#allocation3], 256
    $region9: #{tpu_custom_call.1} parent=1 // pred_fallthru
      _
    %v24 = vld [vmem:[#allocation2] sm:$0xff]
    %v25 = vld [vmem:[#allocation2 + $0x8] sm:$0xff]
    %v26 = vlaneseq
    %v27 = vand.u32 %v26, 127
    %v28 = vadd.s32 %v27, 128
    %29 = vrot.lane.b32.xlu0 %v24, 16
    %v30 = vpop.permute.xlu0 %29
    %31 = vrot.lane.b32.xlu0 %v25, 16
    %v32 = vpop.permute.xlu0 %31
    %vm33 = vcmp.lt.s32.totalorder %v27, 16
    %v34 = vsel %vm33, %v30, %v32
    %v35 = vsel %vm33, %v32, %v30
    %vm36 = vcmp.ge.s32.totalorder %v27, 16
    %vm37 = vcmp.ge.s32.totalorder %v28, 16
    %v38 = vsub.f32 %v24, %v35
    %v39 = vsub.f32 %v25, %v34
    %v40 = vsel %vm36, %v38, 0.0
    %v41 = vsel %vm37, %v39, 0.0
    %42 = vrot.lane.b32.xlu0 %v24, 1
    %v43 = vpop.permute.xlu0 %42
    %44 = vrot.lane.b32.xlu0 %v25, 1
    %v45 = vpop.permute.xlu0 %44
    %vm46 = vcmp.lt.s32.totalorder %v27, 1
    %v47 = vsel %vm46, %v43, %v45
    %v48 = vsel %vm46, %v45, %v43
    %vm49 = vcmp.lt.s32.totalorder %v27, 0
    %v50 = vsub.s32 0, %v27
    %v51 = vsel %vm49, %v50, %v27
    %v52 = vshrl.u32 %v51, 4
    %v53 = vand.u32 %v51, 15
    %v54 = vsub.s32 0, %v53
    %v55 = vsel %vm49, %v54, %v53
    %vm56 = vcmp.lt.s32.totalorder %v28, 0
    %v57 = vsub.s32 0, %v28
    %v58 = vsel %vm56, %v57, %v28
    %v59 = vshrl.u32 %v58, 4
    %v60 = vand.u32 %v58, 15
    %v61 = vsub.s32 0, %v60
    %v62 = vsel %vm56, %v61, %v60
    %vm63 = vcmp.ne.s32.totalorder %v55, 0
    %vm64 = vcmp.ne.s32.totalorder %v62, 0
    %vm65 = vcmp.lt.s32.totalorder %v55, 0
    %vm66 = vcmp.lt.s32.totalorder %v62, 0
    %vm67 = vmand %vm65, %vm63
    %vm68 = vmand %vm66, %vm64
    %v69 = vadd.s32 %v55, 16
    %v70 = vadd.s32 %v62, 16
    %v71 = vsel %vm67, %v69, %v55
    %v72 = vsel %vm68, %v70, %v62
    %vm73 = vcmp.ne.s32.totalorder %v71, 0
    %vm74 = vcmp.ne.s32.totalorder %v72, 0
    %v75 = vsub.f32 %v24, %v48
    %v76 = vsub.f32 %v25, %v47
    %v77 = vsel %vm73, %v75, 0.0
    %v78 = vsel %vm74, %v76, 0.0
    %v79 = vmul.f32 %v40, %v40
    %v80 = vmul.f32 %v41, %v41
    %v81 = vadd.f32 %v79, %v80
    %82 = vadd.xlane.f32.xlu0 %v81
    %v83 = vpop.xlane.xlu0 %82
    %v84 = vrot.slane %v83, 4
    %v85 = vadd.f32 %v83, %v84
    %v86 = vrot.slane %v85, 2
    %v87 = vadd.f32 %v85, %v86
    %v88 = vrot.slane %v87, 1
    %v89 = vadd.f32 %v87, %v88
    %s90 = vtos %v89
    %v91 = vmul.f32 %v77, %v77
    %v92 = vmul.f32 %v78, %v78
    %v93 = vadd.f32 %v91, %v92
    %94 = vadd.xlane.f32.xlu0 %v93
    %v95 = vpop.xlane.xlu0 %94
    %v96 = vrot.slane %v95, 4
    %v97 = vadd.f32 %v95, %v96
    %v98 = vrot.slane %v97, 2
    %v99 = vadd.f32 %v97, %v98
    %v100 = vrot.slane %v99, 1
    %v101 = vadd.f32 %v99, %v100
    %s102 = vtos %v101
    %v103 = vstv %s90
    %v104 = vadd.f32 %v103, 0.0
    %105 = vst [vmem:[#allocation5] sm:$0x1] %v104
    %v106 = vstv %s102
    %v107 = vadd.f32 %v106, 0.0
    %108 = vst [vmem:[#allocation6] sm:$0x1] %v107
    // Predicated region
    $region10: #{tpu_custom_call.1} parent=1 // pred_check
      _
    $region11: #{tpu_custom_call.1} parent=1 // pred_check_branch
      %110 = sbr.rel (0) target = $region13
    $region12: #{tpu_custom_call.1} parent=1 // pred_region
      %s112 = ssub.s32 16, 16
      %113 = vsyncadd [#allocation4], %s112
      %s115 = sshll.u32 [#allocation5], 4
      %s116 = int_to_ptr.vmem [resolvable:$true] %s115
      %118 = dma.vmem_to_hbm [thread:$0]  %s116, 16, %s1, [#allocation4]
    $region13: #{tpu_custom_call.1} parent=1 // pred_fallthru
      _
    // Predicated region
    $region14: #{tpu_custom_call.1} parent=1 // pred_check
      _
    $region15: #{tpu_custom_call.1} parent=1 // pred_check_branch
      %120 = sbr.rel (0) target = $region17
    $region16: #{tpu_custom_call.1} parent=1 // pred_region
      %s122 = ssub.s32 16, 16
      %123 = vsyncadd [#allocation7], %s122
      %s125 = sshll.u32 [#allocation6], 4
      %s126 = int_to_ptr.vmem [resolvable:$true] %s125
      %128 = dma.vmem_to_hbm [thread:$0]  %s126, 16, %s2, [#allocation7]
    $region17: #{tpu_custom_call.1} parent=1 // pred_fallthru
      _
    // Predicated region
    $region18: #{tpu_custom_call.1} parent=1 // pred_check
      _
    $region19: #{tpu_custom_call.1} parent=1 // pred_check_branch
      %130 = sbr.rel (0) target = $region21
    $region20: #{tpu_custom_call.1} parent=1 // pred_region
      %131 = dma.done [#allocation4], 16
    $region21: #{tpu_custom_call.1} parent=1 // pred_fallthru
      _
    // Predicated region
    $region22: #{tpu_custom_call.1} parent=1 // pred_check
      _
    $region23: #{tpu_custom_call.1} parent=1 // pred_check_branch
      %133 = sbr.rel (0) target = $region25
    $region24: #{tpu_custom_call.1} parent=1 // pred_region
      %134 = dma.done [#allocation7], 16
    $region25: #{tpu_custom_call.1} parent=1 // pred_fallthru
      _
    %135 = vsyncpa [#allocation3], 1
    %136 = vsyncpa [#allocation4], 1
    %137 = vsyncpa [#allocation7], 1

</llo_original>
